<compile_context>
chip_gen: v6e
topology: v6e:2x2x1
jax: 0.10.0
libtpu: 0.0.40
codegen_flags: <defaults>
</compile_context>

<pallas_src>
import numpy as np
import jax
import jax.numpy as jnp
from jax.experimental import pallas as pl
from jax.experimental.pallas import tpu as pltpu

_LANES = 128
_TARGET_STEP_BYTES = 3 * 1024 * 1024      # ~3 MiB of HBM traffic per grid step
_ROW_GRANULE = 512                        # multiple of every sublane granule (8/16/32)
_VMEM_LIMIT_BYTES = 32 * 1024 * 1024      # explicit cap: > v5e 16 MiB default, < v7x 64 MiB physical


def _choose_block_rows(n_rows, itemsize1, itemsize2):
    """Dtype/byte-aware block rows: ~_TARGET_STEP_BYTES of HBM traffic per grid step,
    at least ~4 grid blocks (megacore sharding on v7x), rounded to a tiling granule."""
    bytes_per_row = _LANES * (itemsize1 + itemsize2 + 4)     # 2 reads + f32 write
    target = max(_ROW_GRANULE, _TARGET_STEP_BYTES // bytes_per_row)
    quarter = pl.cdiv(n_rows, 4)                             # >= 4 blocks when possible
    rows = min(target, quarter)
    rows = ((rows + _ROW_GRANULE - 1) // _ROW_GRANULE) * _ROW_GRANULE
    return min(n_rows, rows)                                 # full-extent block is always legal


# ----------------------------------------------------------------------------
# Pallas kernel: (optional) folded div_shift rescale + rounded re-quantized add.
# All multipliers / clamp bounds are trace-time Python scalars, so the div_shift
# skip branch resolves at trace time exactly like the eager PyTorch branch.
# ----------------------------------------------------------------------------
def _make_infer_kernel(mul1, lo1, hi1, do_shift1,
                       mul2, lo2, hi2, do_shift2, r1, r2):
    def kernel(x1_ref, x2_ref, y_ref):
        # Cast on the loaded VMEM tile; HBM traffic stays at the source dtype width.
        x1 = x1_ref[...].astype(jnp.float32)
        x2 = x2_ref[...].astype(jnp.float32)
        if do_shift1:   # div_shift for input 1 (divide folded into one f32 multiplier)
            x1 = jnp.clip(jnp.round(x1 * mul1), lo1, hi1)
        if do_shift2:   # div_shift for input 2
            x2 = jnp.clip(jnp.round(x2 * mul2), lo2, hi2)
        y_ref[...] = jnp.round(x1 * r1) + jnp.round(x2 * r2)

    return kernel


def _elemwise_pallas_call(kernel, x1_2d, x2_2d):
    R, L = x1_2d.shape
    assert L == _LANES
    it1 = jnp.dtype(x1_2d.dtype).itemsize
    it2 = jnp.dtype(x2_2d.dtype).itemsize
    block_rows = _choose_block_rows(R, it1, it2)
    grid = (pl.cdiv(R, block_rows),)          # partial trailing block is masked by Pallas
    spec = pl.BlockSpec((block_rows, L), lambda i: (i, 0))

    n = R * L
    cost = pl.CostEstimate(
        flops=6 * n,                          # mul/round/clip/mul/round/add per element (rough)
        transcendentals=0,
        bytes_accessed=n * (it1 + it2 + 4))

    return pl.pallas_call(
        kernel,
        out_shape=jax.ShapeDtypeStruct((R, L), jnp.float32),
        grid=grid,
        in_specs=[spec, spec],
        out_specs=spec,
        compiler_params=pltpu.CompilerParams(
            dimension_semantics=("parallel",),
            vmem_limit_bytes=_VMEM_LIMIT_BYTES),
        cost_estimate=cost,
    )(x1_2d, x2_2d)


# ----------------------------------------------------------------------------
# Module wrapper mirroring OIntInferElemAdd semantics.
# ----------------------------------------------------------------------------
class OIntInferElemAddPallas:
    def __init__(self, *, scale_x1, scale_x2, scale_y,
                 bit_lower1, bit_upper1, bit_lower2, bit_upper2,
                 input1_shape, input2_shape, output_shape):
        self.int_infer_flag = False
        self.scale_x1 = float(scale_x1)
        self.scale_x2 = float(scale_x2)
        self.scale_y = float(scale_y)
        self.lo1, self.hi1 = float(bit_lower1), float(bit_upper1)
        self.lo2, self.hi2 = float(bit_lower2), float(bit_upper2)
        self.input1_shape = tuple(input1_shape)
        self.input2_shape = tuple(input2_shape)
        self.output_shape = tuple(output_shape)
        self.scale_last_layer1 = None
        self.scale_last_layer2 = None
        self._infer_fn = None

    def __call__(self, x1, x2):
        if self.int_infer_flag:
            return self._forward_infer(x1, x2)
        return self._forward_scale(x1, x2)

    # --- calibration path (glue, runs once, host-side) ----------------------
    def _forward_scale(self, scale_x1, scale_x2):
        assert scale_x1.shape == self.input1_shape
        assert scale_x2.shape == self.input2_shape
        u1 = jnp.unique(scale_x1)
        # TODO(synk): non-uniform per-element scale_last_layer1 (the scale_x1[0, 0]
        # slice broadcast in the reference) is not supported; a scalar is extracted.
        scale_last_layer1 = scale_x1[(0,) * scale_x1.ndim] if u1.shape[0] != 1 else u1
        scale_last_layer2 = jnp.unique(scale_x2)
        self.scale_last_layer1 = float(jnp.reshape(scale_last_layer1, (-1,))[0])
        self.scale_last_layer2 = float(jnp.reshape(scale_last_layer2, (-1,))[0])
        self.int_infer_flag = True
        self._infer_fn = None   # scales changed -> rebuild/re-jit the infer path
        return jnp.ones(self.output_shape, jnp.float32) * self.scale_y

    # --- integer-inference hot path (Pallas) ---------------------------------
    def _build_infer_fn(self):
        # All scalar math mirrors the PyTorch f32-tensor scalar math: values are
        # rounded to f32 and the ratios are computed as single f32 divisions ONCE here,
        # so the kernel only does one multiply per shifted input (no per-element divide).
        sl1_f, sx1_f = np.float32(self.scale_last_layer1), np.float32(self.scale_x1)
        sl2_f, sx2_f = np.float32(self.scale_last_layer2), np.float32(self.scale_x2)
        sy_f = np.float32(self.scale_y)
        do_shift1 = bool(sl1_f != sx1_f)     # f32 comparison, like the torch tensor compare
        do_shift2 = bool(sl2_f != sx2_f)
        mul1 = float(sl1_f / sx1_f)          # folded div_shift multiplier (f32)
        mul2 = float(sl2_f / sx2_f)
        r1 = float(sx1_f / sy_f)             # output rescale (reference also pre-folds this)
        r2 = float(sx2_f / sy_f)

        kernel = _make_infer_kernel(mul1, self.lo1, self.hi1, do_shift1,
                                    mul2, self.lo2, self.hi2, do_shift2, r1, r2)

        def infer(x1, x2):
            orig_shape = x1.shape
            n = x1.size
            pad = (-n) % _LANES
            x1f = jnp.reshape(x1, (-1,))
            x2f = jnp.reshape(x2, (-1,))
            if pad:
                # TODO(synk): ragged tails use pad + tail-slice (extra HBM passes); for
                # production ragged shapes switch to in-kernel tail masking via a
                # scalar-prefetched element count.
                x1f = jnp.pad(x1f, (0, pad))
                x2f = jnp.pad(x2f, (0, pad))
            rows = (n + pad) // _LANES
            y = _elemwise_pallas_call(kernel,
                                      x1f.reshape(rows, _LANES),
                                      x2f.reshape(rows, _LANES))
            if pad:
                y = y.reshape(-1)[:n]
            return y.reshape(orig_shape)

        return jax.jit(infer)

    def _forward_infer(self, x1_int, x2_int):
        if self._infer_fn is None:
            self._infer_fn = self._build_infer_fn()
        return self._infer_fn(x1_int, x2_int)


# ----------------------------------------------------------------------------
# Pure-JAX reference of _forward_infer for verification (uses the SAME folded
# f32 multipliers, so it is bit-identical to the kernel math).
# ----------------------------------------------------------------------------
def _reference_infer(x1, x2, sl1, sx1, lo1, hi1, sl2, sx2, lo2, hi2, sy):
    sl1_f, sx1_f = np.float32(sl1), np.float32(sx1)
    sl2_f, sx2_f = np.float32(sl2), np.float32(sx2)
    sy_f = np.float32(sy)
    x1 = x1.astype(jnp.float32)
    x2 = x2.astype(jnp.float32)
    if sl1_f != sx1_f:
        x1 = jnp.clip(jnp.round(x1 * float(sl1_f / sx1_f)), lo1, hi1)
    if sl2_f != sx2_f:
        x2 = jnp.clip(jnp.round(x2 * float(sl2_f / sx2_f)), lo2, hi2)
    return jnp.round(x1 * float(sx1_f / sy_f)) + jnp.round(x2 * float(sx2_f / sy_f))


def _run_case(shape, scale1_prev, scale2_prev,
              dtype1=jnp.float32, dtype2=jnp.float32, seed=0):
    mod = OIntInferElemAddPallas(
        scale_x1=0.05, scale_x2=0.08, scale_y=0.1,
        bit_lower1=-128, bit_upper1=127, bit_lower2=-128, bit_upper2=127,
        input1_shape=shape, input2_shape=shape, output_shape=shape)

    # First call: scale-propagation path (previous-layer scale tensors).
    s1 = jnp.ones(shape, jnp.float32) * scale1_prev
    s2 = jnp.ones(shape, jnp.float32) * scale2_prev
    jax.block_until_ready(mod(s1, s2))

    # Second call: integer-inference path (the Pallas hot path).
    k1, k2 = jax.random.split(jax.random.PRNGKey(seed))
    x1 = jax.random.randint(k1, shape, -128, 128).astype(dtype1)
    x2 = jax.random.randint(k2, shape, -128, 128).astype(dtype2)
    y = jax.block_until_ready(mod(x1, x2))

    y_ref = _reference_infer(
        x1, x2,
        mod.scale_last_layer1, mod.scale_x1, mod.lo1, mod.hi1,
        mod.scale_last_layer2, mod.scale_x2, mod.lo2, mod.hi2,
        mod.scale_y)

    np.testing.assert_allclose(np.asarray(y), np.asarray(y_ref), rtol=0, atol=0)
    assert y.shape == shape and y.dtype == jnp.float32


if __name__ == "__main__":
    # Primary NCHW case: div_shift active on x1 (0.07 != 0.05), skipped on x2 (0.08 == 0.08).
    _run_case((2, 4, 16, 16), scale1_prev=0.07, scale2_prev=0.08, seed=0)
    # Ragged element count with both div_shifts active -> exercises the pad + tail-slice path
    # and the round-at-n.5 boundaries (0.09/0.08 = 1.125) that previously mismatched.
    _run_case((3, 5, 7, 11), scale1_prev=0.06, scale2_prev=0.09, seed=1)
    # Larger case -> multi-block grid with a partial trailing block; int32 x1 exercises
    # the in-kernel dtype cast (no wrapper astype / no extra HBM pass) and the
    # dtype-aware block-row selection.
    _run_case((4, 16, 80, 65), scale1_prev=0.07, scale2_prev=0.08,
              dtype1=jnp.int32, seed=2)
    print("KERNEL_OK")
</pallas_src>

<mosaic_0001>
module attributes {stable_mosaic.version = 11 : i64} {
  func.func @kernel(%arg0: i32, %arg1: memref<16x128xf32, #tpu.memory_space<vmem>>, %arg2: memref<16x128xf32, #tpu.memory_space<vmem>>, %arg3: memref<16x128xf32, #tpu.memory_space<vmem>>) attributes {dimension_semantics = [#tpu.dimension_semantics<parallel>], iteration_bounds = array<i64: 1>, scalar_prefetch = 0 : i64, scratch_operands = 0 : i64, tpu.core_type = #tpu.core_type<tc>, window_params = [{transform_indices = @transform_0, window_bounds = array<i64: 16, 128>}, {transform_indices = @transform_1, window_bounds = array<i64: 16, 128>}, {transform_indices = @transform_2, window_bounds = array<i64: 16, 128>}]} {
    %c0 = arith.constant 0 : index
    %c0_0 = arith.constant 0 : index
    %0 = vector.load %arg1[%c0, %c0_0] : memref<16x128xf32, #tpu.memory_space<vmem>>, vector<16x128xf32>
    %c0_1 = arith.constant 0 : index
    %c0_2 = arith.constant 0 : index
    %1 = vector.load %arg2[%c0_1, %c0_2] : memref<16x128xf32, #tpu.memory_space<vmem>>, vector<16x128xf32>
    %cst = arith.constant 1.400000e+00 : f32
    %2 = vector.broadcast %cst : f32 to vector<16x128xf32>
    %3 = arith.mulf %0, %2 : vector<16x128xf32>
    %4 = math.roundeven %3 : vector<16x128xf32>
    %cst_3 = arith.constant -1.280000e+02 : f32
    %cst_4 = arith.constant 1.270000e+02 : f32
    %5 = vector.broadcast %cst_3 : f32 to vector<16x128xf32>
    %6 = arith.maximumf %5, %4 : vector<16x128xf32>
    %7 = vector.broadcast %cst_4 : f32 to vector<16x128xf32>
    %8 = arith.minimumf %7, %6 : vector<16x128xf32>
    %cst_5 = arith.constant 5.000000e-01 : f32
    %9 = vector.broadcast %cst_5 : f32 to vector<16x128xf32>
    %10 = arith.mulf %8, %9 : vector<16x128xf32>
    %11 = math.roundeven %10 : vector<16x128xf32>
    %cst_6 = arith.constant 0.799999952 : f32
    %12 = vector.broadcast %cst_6 : f32 to vector<16x128xf32>
    %13 = arith.mulf %1, %12 : vector<16x128xf32>
    %14 = math.roundeven %13 : vector<16x128xf32>
    %15 = arith.addf %11, %14 : vector<16x128xf32>
    %c0_7 = arith.constant 0 : index
    %c0_8 = arith.constant 0 : index
    %16 = vector.load %arg3[%c0_7, %c0_8] : memref<16x128xf32, #tpu.memory_space<vmem>>, vector<16x128xf32>
    tpu.vector_store %arg3[%c0_7, %c0_8], %15 {strides = array<i32>} : memref<16x128xf32, #tpu.memory_space<vmem>>, vector<16x128xf32>,
    return
  }
  func.func @transform_0(%arg0: i32) -> (i32, i32) {
    %c0_i32 = arith.constant 0 : i32
    %c0_i32_0 = arith.constant 0 : i32
    return %arg0, %c0_i32 : i32, i32
  }
  func.func @transform_1(%arg0: i32) -> (i32, i32) {
    %c0_i32 = arith.constant 0 : i32
    %c0_i32_0 = arith.constant 0 : i32
    return %arg0, %c0_i32 : i32, i32
  }
  func.func @transform_2(%arg0: i32) -> (i32, i32) {
    %c0_i32 = arith.constant 0 : i32
    %c0_i32_0 = arith.constant 0 : i32
    return %arg0, %c0_i32 : i32, i32
  }
}

</mosaic_0001>

<llo_original>
// kernel: infer.1
$region0: #{infer.1}
  #allocation0 [shape = 'u32[]', space=smem, size = 0x4, offset = 0x4, fixed_abs, tag = 'smem constant byte address 0x4 - core index']
  #allocation1 [shape = 'u32[144,128]{1,0:T(1,128)}', space=vmem, size = 0x12000, scoped, tag = 'internal scratch']
  %s0 = inlined_call_operand.vmem [shape: f32[16,128], index: 0, kind: input, shape index: {}]
  %s1 = inlined_call_operand.vmem [shape: f32[16,128], index: 1, kind: input, shape index: {}]
  %s2 = inlined_call_operand.vmem [shape: f32[16,128], index: 2, kind: output, shape index: {}]
  %s3 = sld [smem:[#allocation0]]
  $region18: #{infer.1} parent=0
    _
  %s5 = ssub.s32 1, %s3
  %s6 = scalar_select 0, %s5, %s3
  // Predicated region
  $region2: #{infer.1} parent=0 // pred_check
    _
  $region3: #{infer.1} parent=0 // pred_check_branch
    %8 = sbr.rel (0) target = $region5
  $region4: #{infer.1} parent=0 // pred_region
    _
  $region5: #{infer.1} parent=0 // pred_fallthru
    _
  // Predicated region
  $region6: #{infer.1} parent=0 // pred_check
    _
  $region7: #{infer.1} parent=0 // pred_check_branch
    %10 = sbr.rel (0) target = $region9
  $region8: #{infer.1} parent=0 // pred_region
    _
  $region9: #{infer.1} parent=0 // pred_fallthru
    _
  %v11 = vld [vmem:[%s0] sm:$0xff]
  %v12 = vld [vmem:[%s0 + $0x8] sm:$0xff]
  %v13 = vld [vmem:[%s1] sm:$0xff]
  %v14 = vld [vmem:[%s1 + $0x8] sm:$0xff]
  %v15 = vmul.f32 %v11, 1.4
  %v16 = vmul.f32 %v12, 1.4
  %v17 = vround.ne.pseudo %v15
  %v18 = vround.ne.pseudo %v16
  %v19 = vmax.f32 %v17, -128.0
  %v20 = vmax.f32 %v18, -128.0
  %v21 = vmin.f32 %v19, 127.0
  %v22 = vmin.f32 %v20, 127.0
  %v23 = vmul.f32 %v21, 0.5
  %v24 = vmul.f32 %v22, 0.5
  %v25 = vround.ne.pseudo %v23
  %v26 = vround.ne.pseudo %v24
  %v27 = vmul.f32 %v13, 0.79999995
  %v28 = vmul.f32 %v14, 0.79999995
  %v29 = vround.ne.pseudo %v27
  %v30 = vround.ne.pseudo %v28
  %v31 = vadd.f32 %v25, %v29
  %v32 = vadd.f32 %v26, %v30
  %33 = vst [vmem:[%s2] sm:$0xff] %v31
  %34 = vst [vmem:[%s2 + $0x8] sm:$0xff] %v32
  // Predicated region
  $region10: #{infer.1} parent=0 // pred_check
    _
  $region11: #{infer.1} parent=0 // pred_check_branch
    %36 = sbr.rel (0) target = $region13
  $region12: #{infer.1} parent=0 // pred_region
    _
  $region13: #{infer.1} parent=0 // pred_fallthru
    _
  // Predicated region
  $region14: #{infer.1} parent=0 // pred_check
    _
  $region15: #{infer.1} parent=0 // pred_check_branch
    %38 = sbr.rel (0) target = $region17
  $region16: #{infer.1} parent=0 // pred_region
    _
  $region17: #{infer.1} parent=0 // pred_fallthru
    _

</llo_original>
